<compile_context>
chip_gen: v5e
topology: v5e:2x2
jax: 0.10.0
libtpu: 0.0.40
codegen_flags: <defaults>
</compile_context>

<pallas_src>
import numpy as np
import jax
import jax.numpy as jnp
from jax.experimental import pallas as pl
from jax.experimental.pallas import tpu as pltpu

_EPS = 1e-5  # nn.BatchNorm2d default eps


def residual_block_forward(x_nchw, params):
    """Equivalent of ResidualBlock.forward (stride=1, eval-mode BN), fused in Pallas."""
    (w1, g1, b1, m1, v1, w2, g2, b2, m2, v2) = params
    N, Cin, H, W = x_nchw.shape
    Cout, Cin_w, K, Kw = w1.shape
    assert K == Kw == 3 and Cin == Cin_w == Cout, "stride=1 basic block (3x3, pad=1) only"
    pad = (K - 1) // 2
    L = H * W                       # flat spatial length; 256 here -> lane-dense
    assert L % 128 == 0, "flat spatial extent must be a multiple of 128 for this path"
    Cp = ((Cout + 7) // 8) * 8      # channels padded to the f32 sublane count (8)

    # ---- wrapper-side parameter prep (tiny, once per call; no activation passes) ----
    x_flat = x_nchw.reshape(N, Cin, L).astype(jnp.float32)      # free reshape

    def fold_bn(gamma, beta, mean, var, n_pad):
        scale = (gamma / jnp.sqrt(var + _EPS)).astype(jnp.float32)
        offset = (beta - mean * scale).astype(jnp.float32)
        scale = jnp.pad(scale, (0, n_pad), constant_values=1.0)
        offset = jnp.pad(offset, (0, n_pad))
        return scale[:, None], offset[:, None]

    sc1, of1 = fold_bn(g1, b1, m1, v1, Cp - Cout)               # (Cp, 1)
    sc2, of2 = fold_bn(g2, b2, m2, v2, 0)                       # (Cout, 1)

    # Stacked weights: column index = (kh*K + kw) * Cp + cin  (zero in padded slots).
    w1p = jnp.pad(w1.astype(jnp.float32), ((0, Cp - Cout), (0, Cp - Cin), (0, 0), (0, 0)))
    W1s = jnp.transpose(w1p, (0, 2, 3, 1)).reshape(Cp, K * K * Cp)        # (Cp, 72)
    w2p = jnp.pad(w2.astype(jnp.float32), ((0, 0), (0, Cp - Cout), (0, 0), (0, 0)))
    W2s = jnp.transpose(w2p, (0, 2, 3, 1)).reshape(Cout, K * K * Cp)      # (Cout, 72)

    # Per-tap validity masks over flat output positions (encode the conv zero-pad).
    rr = np.arange(L) // W
    cc = np.arange(L) % W
    m_np = np.zeros((K * K, 1, L), np.float32)
    for kh in range(K):
        for kw in range(K):
            sr, sc_ = rr + (kh - pad), cc + (kw - pad)
            m_np[kh * K + kw, 0] = ((sr >= 0) & (sr < H) & (sc_ >= 0) & (sc_ < W))
    masks = jnp.asarray(m_np)                                   # (9, 1, L)

    # ---- fused kernel: 2 MXU GEMMs + folded BN + ReLU + residual, all in VMEM ----
    def kernel(x_ref, w1_ref, sc1_ref, of1_ref, w2_ref, sc2_ref, of2_ref, m_ref, o_ref):
        x0 = x_ref[0]                                           # (Cin, L) real channels
        # In-kernel channel pad to Cp so every RHS chunk is sublane-aligned.
        if Cp > Cin:
            xe = jnp.concatenate(
                [x0, jnp.zeros((Cp - Cin, L), jnp.float32)], axis=0)      # (Cp, L)
        else:
            xe = x0

        def stacked_rhs(img):                                   # img: (Cp, L)
            chunks = []
            for kh in range(K):
                for kw in range(K):
                    t = kh * K + kw
                    d = (kh - pad) * W + (kw - pad)             # flat tap offset
                    shifted = img if d == 0 else pltpu.roll(img, shift=(-d) % L, axis=1)
                    chunks.append(shifted * m_ref[t])           # mask kills border taps
            return jnp.concatenate(chunks, axis=0)              # (9*Cp, L)

        # conv1 -> BN1 (folded) -> ReLU : one GEMM, contraction K = 9*Cp.
        h1 = jnp.dot(w1_ref[...], stacked_rhs(xe), preferred_element_type=jnp.float32)
        h1 = jnp.maximum(h1 * sc1_ref[...] + of1_ref[...], 0.0)            # (Cp, L)

        # conv2 -> BN2 (folded) -> ReLU -> += identity residual (module order).
        y = jnp.dot(w2_ref[...], stacked_rhs(h1), preferred_element_type=jnp.float32)
        y = jnp.maximum(y * sc2_ref[...] + of2_ref[...], 0.0) + x0         # (Cout, L)
        o_ref[0] = y.astype(o_ref.dtype)

    out_flat = pl.pallas_call(
        kernel,
        out_shape=jax.ShapeDtypeStruct((N, Cout, L), jnp.float32),
        grid_spec=pltpu.PrefetchScalarGridSpec(
            num_scalar_prefetch=0,
            grid=(N,),
            in_specs=[
                pl.BlockSpec((1, Cin, L), lambda n: (n, 0, 0)),
                pl.BlockSpec((Cp, K * K * Cp), lambda n: (0, 0)),
                pl.BlockSpec((Cp, 1), lambda n: (0, 0)),
                pl.BlockSpec((Cp, 1), lambda n: (0, 0)),
                pl.BlockSpec((Cout, K * K * Cp), lambda n: (0, 0)),
                pl.BlockSpec((Cout, 1), lambda n: (0, 0)),
                pl.BlockSpec((Cout, 1), lambda n: (0, 0)),
                pl.BlockSpec((K * K, 1, L), lambda n: (0, 0, 0)),
            ],
            out_specs=pl.BlockSpec((1, Cout, L), lambda n: (n, 0, 0)),
        ),
        compiler_params=pltpu.CompilerParams(
            dimension_semantics=("parallel",),
        ),
    )(x_flat, W1s, sc1, of1, W2s, sc2, of2, masks)

    return out_flat.reshape(N, Cout, H, W)       # free reshape; no dead bytes stored


def reference_forward(x, params):
    """Pure-JAX reference matching the PyTorch module in eval mode."""
    (w1, g1, b1, m1, v1, w2, g2, b2, m2, v2) = params

    def conv(y, w):
        return jax.lax.conv_general_dilated(
            y, w, window_strides=(1, 1), padding=((1, 1), (1, 1)),
            dimension_numbers=("NCHW", "OIHW", "NCHW"),
            precision=jax.lax.Precision.HIGHEST)

    def bn(y, g, b, m, v):
        s = (g / jnp.sqrt(v + _EPS))[None, :, None, None]
        return (y - m[None, :, None, None]) * s + b[None, :, None, None]

    out = jax.nn.relu(bn(conv(x, w1), g1, b1, m1, v1))
    out = bn(conv(out, w2), g2, b2, m2, v2)
    out = jax.nn.relu(out)          # ReLU first ...
    return out + x                  # ... then += residual (as in the module)


if __name__ == "__main__":
    N, C, H, W, K = 2, 4, 16, 16, 3   # in_channels=out_channels=4, kernel=3, pad=1, stride=1
    keys = jax.random.split(jax.random.PRNGKey(0), 8)

    x = jax.random.normal(keys[0], (N, C, H, W), jnp.float32)

    w1 = 0.1 * jax.random.normal(keys[1], (C, C, K, K), jnp.float32)
    w2 = 0.1 * jax.random.normal(keys[2], (C, C, K, K), jnp.float32)
    g1 = 1.0 + 0.1 * jax.random.normal(keys[3], (C,), jnp.float32)
    b1 = 0.1 * jax.random.normal(keys[4], (C,), jnp.float32)
    g2 = 1.0 + 0.1 * jax.random.normal(keys[5], (C,), jnp.float32)
    b2 = 0.1 * jax.random.normal(keys[6], (C,), jnp.float32)
    m1 = 0.05 * jnp.arange(C, dtype=jnp.float32)
    v1 = 1.0 + 0.10 * jnp.arange(C, dtype=jnp.float32)
    m2 = -0.03 * jnp.arange(C, dtype=jnp.float32)
    v2 = 0.8 + 0.05 * jnp.arange(C, dtype=jnp.float32)

    params = (w1, g1, b1, m1, v1, w2, g2, b2, m2, v2)

    out = residual_block_forward(x, params)
    out = jax.block_until_ready(out)

    ref = reference_forward(x, params)
    assert out.shape == (N, C, H, W), out.shape
    err = float(jnp.max(jnp.abs(out - ref)))
    assert jnp.allclose(out, ref, atol=1e-4, rtol=1e-4), err
    print("KERNEL_OK")
</pallas_src>

<mosaic_0001>
module attributes {stable_mosaic.version = 11 : i64} {
  func.func @kernel(%arg0: i32, %arg1: memref<1x4x256xf32, #tpu.memory_space<vmem>>, %arg2: memref<8x72xf32, #tpu.memory_space<vmem>>, %arg3: memref<8x1xf32, #tpu.memory_space<vmem>>, %arg4: memref<8x1xf32, #tpu.memory_space<vmem>>, %arg5: memref<4x72xf32, #tpu.memory_space<vmem>>, %arg6: memref<4x1xf32, #tpu.memory_space<vmem>>, %arg7: memref<4x1xf32, #tpu.memory_space<vmem>>, %arg8: memref<9x1x256xf32, #tpu.memory_space<vmem>>, %arg9: memref<1x4x256xf32, #tpu.memory_space<vmem>>) attributes {dimension_semantics = [#tpu.dimension_semantics<parallel>], iteration_bounds = array<i64: 2>, scalar_prefetch = 0 : i64, scratch_operands = 0 : i64, tpu.core_type = #tpu.core_type<tc>, window_params = [{transform_indices = @transform_0, window_bounds = array<i64: 1, 4, 256>}, {pipeline_mode = #tpu.pipeline_mode<synchronous>, transform_indices = @transform_1, window_bounds = array<i64: 8, 72>}, {pipeline_mode = #tpu.pipeline_mode<synchronous>, transform_indices = @transform_2, window_bounds = array<i64: 8, 1>}, {pipeline_mode = #tpu.pipeline_mode<synchronous>, transform_indices = @transform_3, window_bounds = array<i64: 8, 1>}, {pipeline_mode = #tpu.pipeline_mode<synchronous>, transform_indices = @transform_4, window_bounds = array<i64: 4, 72>}, {pipeline_mode = #tpu.pipeline_mode<synchronous>, transform_indices = @transform_5, window_bounds = array<i64: 4, 1>}, {pipeline_mode = #tpu.pipeline_mode<synchronous>, transform_indices = @transform_6, window_bounds = array<i64: 4, 1>}, {pipeline_mode = #tpu.pipeline_mode<synchronous>, transform_indices = @transform_7, window_bounds = array<i64: 9, 1, 256>}, {transform_indices = @transform_8, window_bounds = array<i64: 1, 4, 256>}]} {
    %c0 = arith.constant 0 : index
    %c0_0 = arith.constant 0 : index
    %c0_1 = arith.constant 0 : index
    %0 = vector.load %arg1[%c0, %c0_0, %c0_1] : memref<1x4x256xf32, #tpu.memory_space<vmem>>, vector<1x4x256xf32>
    %1 = vector.shape_cast %0 : vector<1x4x256xf32> to vector<4x256xf32>
    %cst = arith.constant 0.000000e+00 : f32
    %2 = vector.broadcast %cst : f32 to vector<4x256xf32>
    %3 = tpu.concatenate %1, %2 in 0 : vector<4x256xf32>, vector<4x256xf32> -> vector<8x256xf32>
    %c0_2 = arith.constant 0 : index
    %c0_3 = arith.constant 0 : index
    %4 = vector.load %arg2[%c0_2, %c0_3] : memref<8x72xf32, #tpu.memory_space<vmem>>, vector<8x72xf32>
    %c17_i32 = arith.constant 17 : i32
    %5 = tpu.dynamic_rotate %3 by %c17_i32 dim 1 : vector<8x256xf32>, i32 -> vector<8x256xf32>
    %c0_4 = arith.constant 0 : index
    %c0_5 = arith.constant 0 : index
    %c0_6 = arith.constant 0 : index
    %6 = vector.load %arg8[%c0_4, %c0_5, %c0_6] : memref<9x1x256xf32, #tpu.memory_space<vmem>>, vector<1x1x256xf32>
    %7 = vector.shape_cast %6 : vector<1x1x256xf32> to vector<1x256xf32>
    %8 = vector.broadcast %7 : vector<1x256xf32> to vector<8x256xf32>
    %9 = arith.mulf %5, %8 : vector<8x256xf32>
    %c16_i32 = arith.constant 16 : i32
    %10 = tpu.dynamic_rotate %3 by %c16_i32 dim 1 : vector<8x256xf32>, i32 -> vector<8x256xf32>
    %c1 = arith.constant 1 : index
    %c0_7 = arith.constant 0 : index
    %c0_8 = arith.constant 0 : index
    %11 = vector.load %arg8[%c1, %c0_7, %c0_8] : memref<9x1x256xf32, #tpu.memory_space<vmem>>, vector<1x1x256xf32>
    %12 = vector.shape_cast %11 : vector<1x1x256xf32> to vector<1x256xf32>
    %13 = vector.broadcast %12 : vector<1x256xf32> to vector<8x256xf32>
    %14 = arith.mulf %10, %13 : vector<8x256xf32>
    %c15_i32 = arith.constant 15 : i32
    %15 = tpu.dynamic_rotate %3 by %c15_i32 dim 1 : vector<8x256xf32>, i32 -> vector<8x256xf32>
    %c2 = arith.constant 2 : index
    %c0_9 = arith.constant 0 : index
    %c0_10 = arith.constant 0 : index
    %16 = vector.load %arg8[%c2, %c0_9, %c0_10] : memref<9x1x256xf32, #tpu.memory_space<vmem>>, vector<1x1x256xf32>
    %17 = vector.shape_cast %16 : vector<1x1x256xf32> to vector<1x256xf32>
    %18 = vector.broadcast %17 : vector<1x256xf32> to vector<8x256xf32>
    %19 = arith.mulf %15, %18 : vector<8x256xf32>
    %c1_i32 = arith.constant 1 : i32
    %20 = tpu.dynamic_rotate %3 by %c1_i32 dim 1 : vector<8x256xf32>, i32 -> vector<8x256xf32>
    %c3 = arith.constant 3 : index
    %c0_11 = arith.constant 0 : index
    %c0_12 = arith.constant 0 : index
    %21 = vector.load %arg8[%c3, %c0_11, %c0_12] : memref<9x1x256xf32, #tpu.memory_space<vmem>>, vector<1x1x256xf32>
    %22 = vector.shape_cast %21 : vector<1x1x256xf32> to vector<1x256xf32>
    %23 = vector.broadcast %22 : vector<1x256xf32> to vector<8x256xf32>
    %24 = arith.mulf %20, %23 : vector<8x256xf32>
    %c4 = arith.constant 4 : index
    %c0_13 = arith.constant 0 : index
    %c0_14 = arith.constant 0 : index
    %25 = vector.load %arg8[%c4, %c0_13, %c0_14] : memref<9x1x256xf32, #tpu.memory_space<vmem>>, vector<1x1x256xf32>
    %26 = vector.shape_cast %25 : vector<1x1x256xf32> to vector<1x256xf32>
    %27 = vector.broadcast %26 : vector<1x256xf32> to vector<8x256xf32>
    %28 = arith.mulf %3, %27 : vector<8x256xf32>
    %c255_i32 = arith.constant 255 : i32
    %29 = tpu.dynamic_rotate %3 by %c255_i32 dim 1 : vector<8x256xf32>, i32 -> vector<8x256xf32>
    %c5 = arith.constant 5 : index
    %c0_15 = arith.constant 0 : index
    %c0_16 = arith.constant 0 : index
    %30 = vector.load %arg8[%c5, %c0_15, %c0_16] : memref<9x1x256xf32, #tpu.memory_space<vmem>>, vector<1x1x256xf32>
    %31 = vector.shape_cast %30 : vector<1x1x256xf32> to vector<1x256xf32>
    %32 = vector.broadcast %31 : vector<1x256xf32> to vector<8x256xf32>
    %33 = arith.mulf %29, %32 : vector<8x256xf32>
    %c241_i32 = arith.constant 241 : i32
    %34 = tpu.dynamic_rotate %3 by %c241_i32 dim 1 : vector<8x256xf32>, i32 -> vector<8x256xf32>
    %c6 = arith.constant 6 : index
    %c0_17 = arith.constant 0 : index
    %c0_18 = arith.constant 0 : index
    %35 = vector.load %arg8[%c6, %c0_17, %c0_18] : memref<9x1x256xf32, #tpu.memory_space<vmem>>, vector<1x1x256xf32>
    %36 = vector.shape_cast %35 : vector<1x1x256xf32> to vector<1x256xf32>
    %37 = vector.broadcast %36 : vector<1x256xf32> to vector<8x256xf32>
    %38 = arith.mulf %34, %37 : vector<8x256xf32>
    %c240_i32 = arith.constant 240 : i32
    %39 = tpu.dynamic_rotate %3 by %c240_i32 dim 1 : vector<8x256xf32>, i32 -> vector<8x256xf32>
    %c7 = arith.constant 7 : index
    %c0_19 = arith.constant 0 : index
    %c0_20 = arith.constant 0 : index
    %40 = vector.load %arg8[%c7, %c0_19, %c0_20] : memref<9x1x256xf32, #tpu.memory_space<vmem>>, vector<1x1x256xf32>
    %41 = vector.shape_cast %40 : vector<1x1x256xf32> to vector<1x256xf32>
    %42 = vector.broadcast %41 : vector<1x256xf32> to vector<8x256xf32>
    %43 = arith.mulf %39, %42 : vector<8x256xf32>
    %c239_i32 = arith.constant 239 : i32
    %44 = tpu.dynamic_rotate %3 by %c239_i32 dim 1 : vector<8x256xf32>, i32 -> vector<8x256xf32>
    %c8 = arith.constant 8 : index
    %c0_21 = arith.constant 0 : index
    %c0_22 = arith.constant 0 : index
    %45 = vector.load %arg8[%c8, %c0_21, %c0_22] : memref<9x1x256xf32, #tpu.memory_space<vmem>>, vector<1x1x256xf32>
    %46 = vector.shape_cast %45 : vector<1x1x256xf32> to vector<1x256xf32>
    %47 = vector.broadcast %46 : vector<1x256xf32> to vector<8x256xf32>
    %48 = arith.mulf %44, %47 : vector<8x256xf32>
    %49 = tpu.concatenate %9, %14, %19, %24, %28, %33, %38, %43, %48 in 0 : vector<8x256xf32>, vector<8x256xf32>, vector<8x256xf32>, vector<8x256xf32>, vector<8x256xf32>, vector<8x256xf32>, vector<8x256xf32>, vector<8x256xf32>, vector<8x256xf32> -> vector<72x256xf32>
    %cst_23 = arith.constant dense<0.000000e+00> : vector<8x256xf32>
    %50 = tpu.matmul %4, %49, %cst_23 {dimension_numbers = #tpu.dot_dimension_numbers<[1], [0], [0], [1], [0, 0, 1, 1], [], []>} : vector<8x72xf32>, vector<72x256xf32>, vector<8x256xf32> -> vector<8x256xf32>
    %c0_24 = arith.constant 0 : index
    %c0_25 = arith.constant 0 : index
    %51 = vector.load %arg3[%c0_24, %c0_25] : memref<8x1xf32, #tpu.memory_space<vmem>>, vector<8x1xf32>
    %52 = vector.broadcast %51 : vector<8x1xf32> to vector<8x256xf32>
    %53 = arith.mulf %50, %52 : vector<8x256xf32>
    %c0_26 = arith.constant 0 : index
    %c0_27 = arith.constant 0 : index
    %54 = vector.load %arg4[%c0_26, %c0_27] : memref<8x1xf32, #tpu.memory_space<vmem>>, vector<8x1xf32>
    %55 = vector.broadcast %54 : vector<8x1xf32> to vector<8x256xf32>
    %56 = arith.addf %53, %55 : vector<8x256xf32>
    %cst_28 = arith.constant 0.000000e+00 : f32
    %57 = vector.broadcast %cst_28 : f32 to vector<8x256xf32>
    %58 = arith.maximumf %56, %57 : vector<8x256xf32>
    %c0_29 = arith.constant 0 : index
    %c0_30 = arith.constant 0 : index
    %59 = vector.load %arg5[%c0_29, %c0_30] : memref<4x72xf32, #tpu.memory_space<vmem>>, vector<4x72xf32>
    %c17_i32_31 = arith.constant 17 : i32
    %60 = tpu.dynamic_rotate %58 by %c17_i32_31 dim 1 : vector<8x256xf32>, i32 -> vector<8x256xf32>
    %c0_32 = arith.constant 0 : index
    %c0_33 = arith.constant 0 : index
    %c0_34 = arith.constant 0 : index
    %61 = vector.load %arg8[%c0_32, %c0_33, %c0_34] : memref<9x1x256xf32, #tpu.memory_space<vmem>>, vector<1x1x256xf32>
    %62 = vector.shape_cast %61 : vector<1x1x256xf32> to vector<1x256xf32>
    %63 = vector.broadcast %62 : vector<1x256xf32> to vector<8x256xf32>
    %64 = arith.mulf %60, %63 : vector<8x256xf32>
    %c16_i32_35 = arith.constant 16 : i32
    %65 = tpu.dynamic_rotate %58 by %c16_i32_35 dim 1 : vector<8x256xf32>, i32 -> vector<8x256xf32>
    %c1_36 = arith.constant 1 : index
    %c0_37 = arith.constant 0 : index
    %c0_38 = arith.constant 0 : index
    %66 = vector.load %arg8[%c1_36, %c0_37, %c0_38] : memref<9x1x256xf32, #tpu.memory_space<vmem>>, vector<1x1x256xf32>
    %67 = vector.shape_cast %66 : vector<1x1x256xf32> to vector<1x256xf32>
    %68 = vector.broadcast %67 : vector<1x256xf32> to vector<8x256xf32>
    %69 = arith.mulf %65, %68 : vector<8x256xf32>
    %c15_i32_39 = arith.constant 15 : i32
    %70 = tpu.dynamic_rotate %58 by %c15_i32_39 dim 1 : vector<8x256xf32>, i32 -> vector<8x256xf32>
    %c2_40 = arith.constant 2 : index
    %c0_41 = arith.constant 0 : index
    %c0_42 = arith.constant 0 : index
    %71 = vector.load %arg8[%c2_40, %c0_41, %c0_42] : memref<9x1x256xf32, #tpu.memory_space<vmem>>, vector<1x1x256xf32>
    %72 = vector.shape_cast %71 : vector<1x1x256xf32> to vector<1x256xf32>
    %73 = vector.broadcast %72 : vector<1x256xf32> to vector<8x256xf32>
    %74 = arith.mulf %70, %73 : vector<8x256xf32>
    %c1_i32_43 = arith.constant 1 : i32
    %75 = tpu.dynamic_rotate %58 by %c1_i32_43 dim 1 : vector<8x256xf32>, i32 -> vector<8x256xf32>
    %c3_44 = arith.constant 3 : index
    %c0_45 = arith.constant 0 : index
    %c0_46 = arith.constant 0 : index
    %76 = vector.load %arg8[%c3_44, %c0_45, %c0_46] : memref<9x1x256xf32, #tpu.memory_space<vmem>>, vector<1x1x256xf32>
    %77 = vector.shape_cast %76 : vector<1x1x256xf32> to vector<1x256xf32>
    %78 = vector.broadcast %77 : vector<1x256xf32> to vector<8x256xf32>
    %79 = arith.mulf %75, %78 : vector<8x256xf32>
    %c4_47 = arith.constant 4 : index
    %c0_48 = arith.constant 0 : index
    %c0_49 = arith.constant 0 : index
    %80 = vector.load %arg8[%c4_47, %c0_48, %c0_49] : memref<9x1x256xf32, #tpu.memory_space<vmem>>, vector<1x1x256xf32>
    %81 = vector.shape_cast %80 : vector<1x1x256xf32> to vector<1x256xf32>
    %82 = vector.broadcast %81 : vector<1x256xf32> to vector<8x256xf32>
    %83 = arith.mulf %58, %82 : vector<8x256xf32>
    %c255_i32_50 = arith.constant 255 : i32
    %84 = tpu.dynamic_rotate %58 by %c255_i32_50 dim 1 : vector<8x256xf32>, i32 -> vector<8x256xf32>
    %c5_51 = arith.constant 5 : index
    %c0_52 = arith.constant 0 : index
    %c0_53 = arith.constant 0 : index
    %85 = vector.load %arg8[%c5_51, %c0_52, %c0_53] : memref<9x1x256xf32, #tpu.memory_space<vmem>>, vector<1x1x256xf32>
    %86 = vector.shape_cast %85 : vector<1x1x256xf32> to vector<1x256xf32>
    %87 = vector.broadcast %86 : vector<1x256xf32> to vector<8x256xf32>
    %88 = arith.mulf %84, %87 : vector<8x256xf32>
    %c241_i32_54 = arith.constant 241 : i32
    %89 = tpu.dynamic_rotate %58 by %c241_i32_54 dim 1 : vector<8x256xf32>, i32 -> vector<8x256xf32>
    %c6_55 = arith.constant 6 : index
    %c0_56 = arith.constant 0 : index
    %c0_57 = arith.constant 0 : index
    %90 = vector.load %arg8[%c6_55, %c0_56, %c0_57] : memref<9x1x256xf32, #tpu.memory_space<vmem>>, vector<1x1x256xf32>
    %91 = vector.shape_cast %90 : vector<1x1x256xf32> to vector<1x256xf32>
    %92 = vector.broadcast %91 : vector<1x256xf32> to vector<8x256xf32>
    %93 = arith.mulf %89, %92 : vector<8x256xf32>
    %c240_i32_58 = arith.constant 240 : i32
    %94 = tpu.dynamic_rotate %58 by %c240_i32_58 dim 1 : vector<8x256xf32>, i32 -> vector<8x256xf32>
    %c7_59 = arith.constant 7 : index
    %c0_60 = arith.constant 0 : index
    %c0_61 = arith.constant 0 : index
    %95 = vector.load %arg8[%c7_59, %c0_60, %c0_61] : memref<9x1x256xf32, #tpu.memory_space<vmem>>, vector<1x1x256xf32>
    %96 = vector.shape_cast %95 : vector<1x1x256xf32> to vector<1x256xf32>
    %97 = vector.broadcast %96 : vector<1x256xf32> to vector<8x256xf32>
    %98 = arith.mulf %94, %97 : vector<8x256xf32>
    %c239_i32_62 = arith.constant 239 : i32
    %99 = tpu.dynamic_rotate %58 by %c239_i32_62 dim 1 : vector<8x256xf32>, i32 -> vector<8x256xf32>
    %c8_63 = arith.constant 8 : index
    %c0_64 = arith.constant 0 : index
    %c0_65 = arith.constant 0 : index
    %100 = vector.load %arg8[%c8_63, %c0_64, %c0_65] : memref<9x1x256xf32, #tpu.memory_space<vmem>>, vector<1x1x256xf32>
    %101 = vector.shape_cast %100 : vector<1x1x256xf32> to vector<1x256xf32>
    %102 = vector.broadcast %101 : vector<1x256xf32> to vector<8x256xf32>
    %103 = arith.mulf %99, %102 : vector<8x256xf32>
    %104 = tpu.concatenate %64, %69, %74, %79, %83, %88, %93, %98, %103 in 0 : vector<8x256xf32>, vector<8x256xf32>, vector<8x256xf32>, vector<8x256xf32>, vector<8x256xf32>, vector<8x256xf32>, vector<8x256xf32>, vector<8x256xf32>, vector<8x256xf32> -> vector<72x256xf32>
    %cst_66 = arith.constant dense<0.000000e+00> : vector<4x256xf32>
    %105 = tpu.matmul %59, %104, %cst_66 {dimension_numbers = #tpu.dot_dimension_numbers<[1], [0], [0], [1], [0, 0, 1, 1], [], []>} : vector<4x72xf32>, vector<72x256xf32>, vector<4x256xf32> -> vector<4x256xf32>
    %c0_67 = arith.constant 0 : index
    %c0_68 = arith.constant 0 : index
    %106 = vector.load %arg6[%c0_67, %c0_68] : memref<4x1xf32, #tpu.memory_space<vmem>>, vector<4x1xf32>
    %107 = vector.broadcast %106 : vector<4x1xf32> to vector<4x256xf32>
    %108 = arith.mulf %105, %107 : vector<4x256xf32>
    %c0_69 = arith.constant 0 : index
    %c0_70 = arith.constant 0 : index
    %109 = vector.load %arg7[%c0_69, %c0_70] : memref<4x1xf32, #tpu.memory_space<vmem>>, vector<4x1xf32>
    %110 = vector.broadcast %109 : vector<4x1xf32> to vector<4x256xf32>
    %111 = arith.addf %108, %110 : vector<4x256xf32>
    %cst_71 = arith.constant 0.000000e+00 : f32
    %112 = vector.broadcast %cst_71 : f32 to vector<4x256xf32>
    %113 = arith.maximumf %111, %112 : vector<4x256xf32>
    %114 = arith.addf %113, %1 : vector<4x256xf32>
    %c0_72 = arith.constant 0 : index
    %c0_73 = arith.constant 0 : index
    %c0_74 = arith.constant 0 : index
    %115 = vector.load %arg9[%c0_72, %c0_73, %c0_74] : memref<1x4x256xf32, #tpu.memory_space<vmem>>, vector<1x4x256xf32>
    %116 = vector.shape_cast %115 : vector<1x4x256xf32> to vector<4x256xf32>
    %117 = vector.shape_cast %114 : vector<4x256xf32> to vector<1x4x256xf32>
    tpu.vector_store %arg9[%c0_72, %c0_73, %c0_74], %117 {strides = array<i32>} : memref<1x4x256xf32, #tpu.memory_space<vmem>>, vector<1x4x256xf32>,
    return
  }
  func.func @transform_0(%arg0: i32) -> (i32, i32, i32) {
    %c0_i32 = arith.constant 0 : i32
    %c0_i32_0 = arith.constant 0 : i32
    %c0_i32_1 = arith.constant 0 : i32
    return %arg0, %c0_i32, %c0_i32_0 : i32, i32, i32
  }
  func.func @transform_1(%arg0: i32) -> (i32, i32) {
    %c0_i32 = arith.constant 0 : i32
    %c0_i32_0 = arith.constant 0 : i32
    %c0_i32_1 = arith.constant 0 : i32
    return %c0_i32, %c0_i32_0 : i32, i32
  }
  func.func @transform_2(%arg0: i32) -> (i32, i32) {
    %c0_i32 = arith.constant 0 : i32
    %c0_i32_0 = arith.constant 0 : i32
    %c0_i32_1 = arith.constant 0 : i32
    return %c0_i32, %c0_i32_0 : i32, i32
  }
  func.func @transform_3(%arg0: i32) -> (i32, i32) {
    %c0_i32 = arith.constant 0 : i32
    %c0_i32_0 = arith.constant 0 : i32
    %c0_i32_1 = arith.constant 0 : i32
    return %c0_i32, %c0_i32_0 : i32, i32
  }
  func.func @transform_4(%arg0: i32) -> (i32, i32) {
    %c0_i32 = arith.constant 0 : i32
    %c0_i32_0 = arith.constant 0 : i32
    %c0_i32_1 = arith.constant 0 : i32
    return %c0_i32, %c0_i32_0 : i32, i32
  }
  func.func @transform_5(%arg0: i32) -> (i32, i32) {
    %c0_i32 = arith.constant 0 : i32
    %c0_i32_0 = arith.constant 0 : i32
    %c0_i32_1 = arith.constant 0 : i32
    return %c0_i32, %c0_i32_0 : i32, i32
  }
  func.func @transform_6(%arg0: i32) -> (i32, i32) {
    %c0_i32 = arith.constant 0 : i32
    %c0_i32_0 = arith.constant 0 : i32
    %c0_i32_1 = arith.constant 0 : i32
    return %c0_i32, %c0_i32_0 : i32, i32
  }
  func.func @transform_7(%arg0: i32) -> (i32, i32, i32) {
    %c0_i32 = arith.constant 0 : i32
    %c0_i32_0 = arith.constant 0 : i32
    %c0_i32_1 = arith.constant 0 : i32
    %c0_i32_2 = arith.constant 0 : i32
    return %c0_i32, %c0_i32_0, %c0_i32_1 : i32, i32, i32
  }
  func.func @transform_8(%arg0: i32) -> (i32, i32, i32) {
    %c0_i32 = arith.constant 0 : i32
    %c0_i32_0 = arith.constant 0 : i32
    %c0_i32_1 = arith.constant 0 : i32
    return %arg0, %c0_i32, %c0_i32_0 : i32, i32, i32
  }
}

</mosaic_0001>

<llo_original>
// kernel: tpu_custom_call.1
$region0: #{tpu_custom_call.1}
  #allocation0 [shape = 'u32[]', space=smem, size = 0x4, offset = 0x4, fixed_abs, tag = 'smem constant byte address 0x4 - core index']
  #allocation1 [shape = 'u32[72,128]{1,0:T(1,128)}', space=vmem, size = 0x9000, scoped, tag = 'internal scratch']
  %s0 = inlined_call_operand.vmem [shape: f32[2,4,256], index: 0, kind: input, shape index: {}]
  %s1 = inlined_call_operand.hbm [shape: f32[8,72], index: 1, kind: input, shape index: {}]
  %s2 = inlined_call_operand.vmem [shape: f32[8,1], index: 2, kind: input, shape index: {}]
  %s3 = inlined_call_operand.vmem [shape: f32[8,1], index: 3, kind: input, shape index: {}]
  %s4 = inlined_call_operand.vmem [shape: f32[4,72], index: 4, kind: input, shape index: {}]
  %s5 = inlined_call_operand.vmem [shape: f32[4,1], index: 5, kind: input, shape index: {}]
  %s6 = inlined_call_operand.vmem [shape: f32[4,1], index: 6, kind: input, shape index: {}]
  %s7 = inlined_call_operand.hbm [shape: f32[9,1,256], index: 7, kind: input, shape index: {}]
  %s8 = inlined_call_operand.hbm [shape: f32[2,4,256], index: 8, kind: output, shape index: {}]
  %s9 = sld [smem:[#allocation0]]
  $region73: #{tpu_custom_call.1} parent=0
    _
  %s11 = ssub.s32 1, %s9
  %s12 = scalar_select 0, %s11, %s9
  $region1: #{tpu_custom_call.1} parent=0
    #allocation2 [shape = 'u8[4096]{0}', space=vmem, size = 0x1000, scoped, tag = 'input window, operand 1, single buffered']
    #allocation3 [shape = 's32[2]{0}', space=sflag, size = 0x8, scoped, tag = 'scoped memory for tpu_custom_call.1']
    #allocation4 [shape = 's32[2]{0}', space=sflag, size = 0x8, scoped, tag = 'scoped memory for tpu_custom_call.1']
    #allocation5 [shape = 'u8[9216]{0}', space=vmem, size = 0x2400, scoped, tag = 'input window, operand 7, single buffered']
    #allocation6 [shape = 's32[1]{0}', space=sflag, size = 0x4, scoped, tag = 'scoped memory for tpu_custom_call.1']
    #allocation7 [shape = 'u8[8192]{0}', space=vmem, size = 0x2000, scoped, tag = 'output window, operand 0']
    %13 = vsyncpa [#allocation3], 0
    %14 = vsyncpa [#allocation6], 0
    %15 = vsyncpa [#allocation4], 0
    %s16 = scalar_lea.sflag [#allocation4], 1
    %17 = vsyncpa %s16, 0
    loop: start=0, step=1, limit=4
    $region2: #{tpu_custom_call.1} parent=1 // loop_pre_header
      _
    $region3: #{tpu_custom_call.1} parent=1 // loop_header
      %s19 = sphi 0, %s23
      %p20 = scmp.ge.s32.totalorder %s19, 4
      %s29 = sphi 0, %s31
      %s32 = sphi 0, %s29
      %s33 = sphi 0, %s32
      %s49 = sphi 0, %s33
      %s53 = sphi 0, %s53
      %s55 = sphi 0, %s53
      %s56 = sphi 0, %s55
      %s70 = sphi 0, %s56
      %s74 = sphi 0, %s74
      %s76 = sphi 0, %s74
      %s77 = sphi 0, %s76
      %s91 = sphi 0, %s77
      %s95 = sphi 0, %s95
      %s97 = sphi 0, %s95
      %s98 = sphi 0, %s97
      %s112 = sphi 0, %s98
      %s116 = sphi 0, %s116
      %s118 = sphi 0, %s116
      %s119 = sphi 0, %s118
      %s133 = sphi 0, %s119
      %s137 = sphi 0, %s137
      %s139 = sphi 0, %s137
      %s140 = sphi 0, %s139
      %s154 = sphi 0, %s140
      %s158 = sphi 0, %s158
      %s160 = sphi 0, %s158
      %s161 = sphi 0, %s160
      %s175 = sphi 0, %s161
      %s179 = sphi 0, %s179
      %s181 = sphi 0, %s179
      %s182 = sphi 0, %s181
      %s196 = sphi 0, %s182
      %s202 = sphi 0, %s204
      %s205 = sphi 0, %s202
      %s206 = sphi 0, %s205
      %s222 = sphi 0, %s206
    $region4: #{tpu_custom_call.1} parent=1 // loop_header_branch
      %22 = sbr.rel (%p20) target = $region8
    $region5: #{tpu_custom_call.1} parent=1 // loop_body
      %s24 = ssub.s32 %s19, 1
      %s25 = ssub.s32 %s19, 2
      %s26 = sadd.s32 %s19, 1
      %s27 = ssub.s32 %s19, %s26
      %p28 = scmp.eq.s32.totalorder %s27, 0
      %s30 = sadd.s32 %s29, 1
      %s31 = scalar_select %p28, %s29, %s30
      %p34 = pneg %p28
      %p35 = scmp.eq.s32.totalorder %s19, 1
      %p36 = por %p34, %p35
      %p37 = scmp.ne.s32.totalorder %s29, %s32
      %p38 = scmp.eq.s32.totalorder %s19, 0
      %p39 = por %p37, %p38
      %p40 = scmp.ne.s32.totalorder %s29, %s32
      %p41 = scmp.eq.s32.totalorder %s24, 1
      %p42 = por %p40, %p41
      %p43 = scmp.ne.s32.totalorder %s32, %s33
      %p44 = scmp.eq.s32.totalorder %s24, 0
      %p45 = por %p43, %p44
      %p46 = scmp.ne.s32.totalorder %s32, %s33
      %p47 = scmp.eq.s32.totalorder %s25, 1
      %p48 = por %p46, %p47
      %p50 = scmp.ne.s32.totalorder %s33, %s49
      %p51 = scmp.eq.s32.totalorder %s25, 0
      %p52 = por %p50, %p51
      %s54 = sadd.s32 %s53, 1
      %p57 = scmp.eq.s32.totalorder %s19, 1
      %p58 = scmp.ne.s32.totalorder %s53, %s55
      %p59 = scmp.eq.s32.totalorder %s19, 0
      %p60 = por %p58, %p59
      %p61 = scmp.ne.s32.totalorder %s53, %s55
      %p62 = scmp.eq.s32.totalorder %s24, 1
      %p63 = por %p61, %p62
      %p64 = scmp.ne.s32.totalorder %s55, %s56
      %p65 = scmp.eq.s32.totalorder %s24, 0
      %p66 = por %p64, %p65
      %p67 = scmp.ne.s32.totalorder %s55, %s56
      %p68 = scmp.eq.s32.totalorder %s25, 1
      %p69 = por %p67, %p68
      %p71 = scmp.ne.s32.totalorder %s56, %s70
      %p72 = scmp.eq.s32.totalorder %s25, 0
      %p73 = por %p71, %p72
      %s75 = sadd.s32 %s74, 1
      %p78 = scmp.eq.s32.totalorder %s19, 1
      %p79 = scmp.ne.s32.totalorder %s74, %s76
      %p80 = scmp.eq.s32.totalorder %s19, 0
      %p81 = por %p79, %p80
      %p82 = scmp.ne.s32.totalorder %s74, %s76
      %p83 = scmp.eq.s32.totalorder %s24, 1
      %p84 = por %p82, %p83
      %p85 = scmp.ne.s32.totalorder %s76, %s77
      %p86 = scmp.eq.s32.totalorder %s24, 0
      %p87 = por %p85, %p86
      %p88 = scmp.ne.s32.totalorder %s76, %s77
      %p89 = scmp.eq.s32.totalorder %s25, 1
      %p90 = por %p88, %p89
      %p92 = scmp.ne.s32.totalorder %s77, %s91
      %p93 = scmp.eq.s32.totalorder %s25, 0
      %p94 = por %p92, %p93
      %s96 = sadd.s32 %s95, 1
      %p99 = scmp.eq.s32.totalorder %s19, 1
      %p100 = scmp.ne.s32.totalorder %s95, %s97
      %p101 = scmp.eq.s32.totalorder %s19, 0
      %p102 = por %p100, %p101
      %p103 = scmp.ne.s32.totalorder %s95, %s97
      %p104 = scmp.eq.s32.totalorder %s24, 1
      %p105 = por %p103, %p104
      %p106 = scmp.ne.s32.totalorder %s97, %s98
      %p107 = scmp.eq.s32.totalorder %s24, 0
      %p108 = por %p106, %p107
      %p109 = scmp.ne.s32.totalorder %s97, %s98
      %p110 = scmp.eq.s32.totalorder %s25, 1
      %p111 = por %p109, %p110
      %p113 = scmp.ne.s32.totalorder %s98, %s112
      %p114 = scmp.eq.s32.totalorder %s25, 0
      %p115 = por %p113, %p114
      %s117 = sadd.s32 %s116, 1
      %p120 = scmp.eq.s32.totalorder %s19, 1
      %p121 = scmp.ne.s32.totalorder %s116, %s118
      %p122 = scmp.eq.s32.totalorder %s19, 0
      %p123 = por %p121, %p122
      %p124 = scmp.ne.s32.totalorder %s116, %s118
      %p125 = scmp.eq.s32.totalorder %s24, 1
      %p126 = por %p124, %p125
      %p127 = scmp.ne.s32.totalorder %s118, %s119
      %p128 = scmp.eq.s32.totalorder %s24, 0
      %p129 = por %p127, %p128
      %p130 = scmp.ne.s32.totalorder %s118, %s119
      %p131 = scmp.eq.s32.totalorder %s25, 1
      %p132 = por %p130, %p131
      %p134 = scmp.ne.s32.totalorder %s119, %s133
      %p135 = scmp.eq.s32.totalorder %s25, 0
      %p136 = por %p134, %p135
      %s138 = sadd.s32 %s137, 1
      %p141 = scmp.eq.s32.totalorder %s19, 1
      %p142 = scmp.ne.s32.totalorder %s137, %s139
      %p143 = scmp.eq.s32.totalorder %s19, 0
      %p144 = por %p142, %p143
      %p145 = scmp.ne.s32.totalorder %s137, %s139
      %p146 = scmp.eq.s32.totalorder %s24, 1
      %p147 = por %p145, %p146
      %p148 = scmp.ne.s32.totalorder %s139, %s140
      %p149 = scmp.eq.s32.totalorder %s24, 0
      %p150 = por %p148, %p149
      %p151 = scmp.ne.s32.totalorder %s139, %s140
      %p152 = scmp.eq.s32.totalorder %s25, 1
      %p153 = por %p151, %p152
      %p155 = scmp.ne.s32.totalorder %s140, %s154
      %p156 = scmp.eq.s32.totalorder %s25, 0
      %p157 = por %p155, %p156
      %s159 = sadd.s32 %s158, 1
      %p162 = scmp.eq.s32.totalorder %s19, 1
      %p163 = scmp.ne.s32.totalorder %s158, %s160
      %p164 = scmp.eq.s32.totalorder %s19, 0
      %p165 = por %p163, %p164
      %p166 = scmp.ne.s32.totalorder %s158, %s160
      %p167 = scmp.eq.s32.totalorder %s24, 1
      %p168 = por %p166, %p167
      %p169 = scmp.ne.s32.totalorder %s160, %s161
      %p170 = scmp.eq.s32.totalorder %s24, 0
      %p171 = por %p169, %p170
      %p172 = scmp.ne.s32.totalorder %s160, %s161
      %p173 = scmp.eq.s32.totalorder %s25, 1
      %p174 = por %p172, %p173
      %p176 = scmp.ne.s32.totalorder %s161, %s175
      %p177 = scmp.eq.s32.totalorder %s25, 0
      %p178 = por %p176, %p177
      %s180 = sadd.s32 %s179, 1
      %p183 = scmp.eq.s32.totalorder %s19, 1
      %p184 = scmp.ne.s32.totalorder %s179, %s181
      %p185 = scmp.eq.s32.totalorder %s19, 0
      %p186 = por %p184, %p185
      %p187 = scmp.ne.s32.totalorder %s179, %s181
      %p188 = scmp.eq.s32.totalorder %s24, 1
      %p189 = por %p187, %p188
      %p190 = scmp.ne.s32.totalorder %s181, %s182
      %p191 = scmp.eq.s32.totalorder %s24, 0
      %p192 = por %p190, %p191
      %p193 = scmp.ne.s32.totalorder %s181, %s182
      %p194 = scmp.eq.s32.totalorder %s25, 1
      %p195 = por %p193, %p194
      %p197 = scmp.ne.s32.totalorder %s182, %s196
      %p198 = scmp.eq.s32.totalorder %s25, 0
      %p199 = por %p197, %p198
      %s200 = ssub.s32 %s19, %s26
      %p201 = scmp.eq.s32.totalorder %s200, 0
      %s203 = sadd.s32 %s202, 1
      %s204 = scalar_select %p201, %s202, %s203
      %p207 = pneg %p201
      %p208 = scmp.eq.s32.totalorder %s19, 1
      %p209 = por %p207, %p208
      %p210 = scmp.ne.s32.totalorder %s202, %s205
      %p211 = scmp.eq.s32.totalorder %s19, 0
      %p212 = por %p210, %p211
      %p213 = scmp.ne.s32.totalorder %s202, %s205
      %p214 = scmp.eq.s32.totalorder %s24, 1
      %p215 = por %p213, %p214
      %p216 = scmp.ne.s32.totalorder %s205, %s206
      %p217 = scmp.eq.s32.totalorder %s24, 0
      %p218 = por %p216, %p217
      %p219 = scmp.ne.s32.totalorder %s205, %s206
      %p220 = scmp.eq.s32.totalorder %s25, 1
      %p221 = por %p219, %p220
      %p223 = scmp.ne.s32.totalorder %s206, %s222
      %p224 = scmp.eq.s32.totalorder %s25, 0
      %p225 = por %p223, %p224
      %p226 = scmp.le.s32.totalorder 1, %s19
      %p227 = scmp.lt.s32.totalorder %s19, 3
      %p228 = pnand %p226, %p227
      %p229 = pneg %p228
      // Predicated region
      $region9: #{tpu_custom_call.1} parent=5 // pred_check
        _
      $region10: #{tpu_custom_call.1} parent=5 // pred_check_branch
        %231 = sbr.rel (%p228) target = $region12
      $region11: #{tpu_custom_call.1} parent=5 // pred_region
        %s232 = ssub.s32 %s19, 1
        // Predicated region
        $region13: #{tpu_custom_call.1} parent=11 // pred_check
          %p233 = pneg %p66
        $region14: #{tpu_custom_call.1} parent=11 // pred_check_branch
          %235 = sbr.rel (%p233) target = $region16
        $region15: #{tpu_custom_call.1} parent=11 // pred_region
          %237 = vsyncadd [#allocation3], 0
          %s239 = sshll.u32 %s1, 4
          %s240 = int_to_ptr.hbm [resolvable:$true] %s239
          %s241 = sshll.u32 [#allocation2], 4
          %s242 = int_to_ptr.vmem [resolvable:$true] %s241
          %244 = dma.hbm_to_vmem [thread:$0]  %s240, 128, %s242, [#allocation3]
        $region16: #{tpu_custom_call.1} parent=11 // pred_fallthru
          _
        // Predicated region
        $region17: #{tpu_custom_call.1} parent=11 // pred_check
          %p245 = pneg %p87
        $region18: #{tpu_custom_call.1} parent=11 // pred_check_branch
          %247 = sbr.rel (%p245) target = $region20
        $region19: #{tpu_custom_call.1} parent=11 // pred_region
          _
        $region20: #{tpu_custom_call.1} parent=11 // pred_fallthru
          _
        // Predicated region
        $region21: #{tpu_custom_call.1} parent=11 // pred_check
          %p248 = pneg %p108
        $region22: #{tpu_custom_call.1} parent=11 // pred_check_branch
          %250 = sbr.rel (%p248) target = $region24
        $region23: #{tpu_custom_call.1} parent=11 // pred_region
          _
        $region24: #{tpu_custom_call.1} parent=11 // pred_fallthru
          _
        // Predicated region
        $region25: #{tpu_custom_call.1} parent=11 // pred_check
          %p251 = pneg %p129
        $region26: #{tpu_custom_call.1} parent=11 // pred_check_branch
          %253 = sbr.rel (%p251) target = $region28
        $region27: #{tpu_custom_call.1} parent=11 // pred_region
          _
        $region28: #{tpu_custom_call.1} parent=11 // pred_fallthru
          _
        // Predicated region
        $region29: #{tpu_custom_call.1} parent=11 // pred_check
          %p254 = pneg %p150
        $region30: #{tpu_custom_call.1} parent=11 // pred_check_branch
          %256 = sbr.rel (%p254) target = $region32
        $region31: #{tpu_custom_call.1} parent=11 // pred_region
          _
        $region32: #{tpu_custom_call.1} parent=11 // pred_fallthru
          _
        // Predicated region
        $region33: #{tpu_custom_call.1} parent=11 // pred_check
          %p257 = pneg %p171
        $region34: #{tpu_custom_call.1} parent=11 // pred_check_branch
          %259 = sbr.rel (%p257) target = $region36
        $region35: #{tpu_custom_call.1} parent=11 // pred_region
          _
        $region36: #{tpu_custom_call.1} parent=11 // pred_fallthru
          _
        // Predicated region
        $region37: #{tpu_custom_call.1} parent=11 // pred_check
          %p260 = pneg %p192
        $region38: #{tpu_custom_call.1} parent=11 // pred_check_branch
          %262 = sbr.rel (%p260) target = $region40
        $region39: #{tpu_custom_call.1} parent=11 // pred_region
          %264 = vsyncadd [#allocation6], 0
          %s265 = sshll.u32 %s7, 4
          %s266 = int_to_ptr.hbm [resolvable:$true] %s265
          %s267 = sshll.u32 [#allocation5], 4
          %s268 = int_to_ptr.vmem [resolvable:$true] %s267
          %273 = dma.hbm_to_vmem [thread:$0]  %s266, 288, %s268, [#allocation6], 32, 32, 2
        $region40: #{tpu_custom_call.1} parent=11 // pred_fallthru
          _
      $region12: #{tpu_custom_call.1} parent=5 // pred_fallthru
        _
      %p274 = scmp.lt.s32.totalorder %s19, 2
      // Predicated region
      $region41: #{tpu_custom_call.1} parent=5 // pred_check
        %p275 = pneg %p274
      $region42: #{tpu_custom_call.1} parent=5 // pred_check_branch
        %277 = sbr.rel (%p275) target = $region44
      $region43: #{tpu_custom_call.1} parent=5 // pred_region
        // Predicated region
        $region45: #{tpu_custom_call.1} parent=43 // pred_check
          %p278 = pneg %p39
        $region46: #{tpu_custom_call.1} parent=43 // pred_check_branch
          %280 = sbr.rel (%p278) target = $region48
        $region47: #{tpu_custom_call.1} parent=43 // pred_region
          %p281 = scmp.lt.s32.totalorder %s19, 1
          %s282 = scalar_select %p281, %s19, 1
          %s283 = smul.addr %s282, 2
          %s284 = smul.addr %s283, 4
          %s285 = scalar_lea.vmem %s0, %s284
        $region48: #{tpu_custom_call.1} parent=43 // pred_fallthru
          _
      $region44: #{tpu_custom_call.1} parent=5 // pred_fallthru
        _
      %p286 = scmp.le.s32.totalorder 1, %s19
      %p287 = scmp.lt.s32.totalorder %s19, 3
      %p288 = pnand %p286, %p287
      %p289 = pneg %p288
      // Predicated region
      $region49: #{tpu_custom_call.1} parent=5 // pred_check
        _
      $region50: #{tpu_custom_call.1} parent=5 // pred_check_branch
        %291 = sbr.rel (%p288) target = $region52
      $region51: #{tpu_custom_call.1} parent=5 // pred_region
        %s292 = ssub.s32 %s19, 1
        // Predicated region
        $region53: #{tpu_custom_call.1} parent=51 // pred_check
          %p293 = pneg %p66
        $region54: #{tpu_custom_call.1} parent=51 // pred_check_branch
          %295 = sbr.rel (%p293) target = $region56
        $region55: #{tpu_custom_call.1} parent=51 // pred_region
          %297 = dma.done [#allocation3], 128
        $region56: #{tpu_custom_call.1} parent=51 // pred_fallthru
          _
        // Predicated region
        $region57: #{tpu_custom_call.1} parent=51 // pred_check
          %p298 = pneg %p192
        $region58: #{tpu_custom_call.1} parent=51 // pred_check_branch
          %300 = sbr.rel (%p298) target = $region60
        $region59: #{tpu_custom_call.1} parent=51 // pred_region
          %302 = dma.done [#allocation6], 288
        $region60: #{tpu_custom_call.1} parent=51 // pred_fallthru
          _
        %p303 = scmp.lt.s32.totalorder %s24, 1
        %s304 = scalar_select %p303, %s24, 1
        %s305 = smul.addr %s304, 2
        %s306 = smul.addr %s305, 4
        %s307 = scalar_lea.vmem %s0, %s306
        %p308 = pneg %p45
        %p309 = pneg %p42
        %p310 = pneg %p66
        %p311 = pneg %p63
        %p312 = pneg %p87
        %p313 = pneg %p84
        %p314 = pneg %p108
        %p315 = pneg %p105
        %p316 = pneg %p129
        %p317 = pneg %p126
        %p318 = pneg %p150
        %p319 = pneg %p147
        %p320 = pneg %p171
        %p321 = pneg %p168
        %p322 = pneg %p192
        %p323 = pneg %p189
        %p324 = pneg %p218
        %p325 = pneg %p215
        %s326 = sand.u32 %s205, 1
        %s327 = scalar_lea.sflag [#allocation4], %s326
        %s328 = sand.u32 %s205, 1
        %s329 = smul.addr %s328, 8
        %s330 = scalar_lea.vmem [#allocation7], %s329
        %p331 = scmp.lt.s32.totalorder %s24, 1
        %s332 = scalar_select %p331, %s24, 1
        %s333 = smul.addr %s332, 2
        %s334 = smul.addr %s333, 4
        %s335 = scalar_lea.vmem %s0, %s334
        %v336 = vld [vmem:[%s335] sm:$0xff]
        %338 = vst [vmem:[#allocation1] ss:$2 sm:$0xff] %v336
        %v339 = vld.sshfl [vmem:[#allocation1] sm:$0xff pattern:$0x75316420]
        %v340 = vld.sshfl [vmem:[#allocation1 + $0x8] sm:$0xff pattern:$0x75316420]
        %vm343 = vcmask 1043456
        %v344 = vsel %vm343, %v339, 0.0
        %v345 = vsel %vm343, %v340, 0.0
        %v346 = vld [vmem:[#allocation2] sm:$0xff]
        %347 = vrot.lane.b32.xlu0 %v344, 17
        %v348 = vpop.permute.xlu0 %347
        %349 = vrot.lane.b32.xlu0 %v345, 17
        %v350 = vpop.permute.xlu0 %349
        %v351 = vlaneseq
        %v352 = vand.u32 %v351, 127
        %vm353 = vcmp.lt.s32.totalorder %v352, 17
        %v354 = vsel %vm353, %v348, %v350
        %v355 = vsel %vm353, %v350, %v348
        %v356 = vld [vmem:[#allocation5] sm:$0x3]
        %v358 = vperm.slane %v356, 0
        %v359 = vperm.slane %v356, 1
        %v362 = vmul.f32 %v355, %v358
        %v363 = vmul.f32 %v354, %v359
        %364 = vrot.lane.b32.xlu0 %v344, 16
        %v365 = vpop.permute.xlu0 %364
        %366 = vrot.lane.b32.xlu0 %v345, 16
        %v367 = vpop.permute.xlu0 %366
        %vm368 = vcmp.lt.s32.totalorder %v352, 16
        %v369 = vsel %vm368, %v365, %v367
        %v370 = vsel %vm368, %v367, %v365
        %s371 = scalar_lea.vmem [#allocation5], 2
        %v372 = vld [vmem:[%s371] sm:$0x3]
        %v374 = vperm.slane %v372, 0
        %v375 = vperm.slane %v372, 1
        %v378 = vmul.f32 %v370, %v374
        %v379 = vmul.f32 %v369, %v375
        %380 = vrot.lane.b32.xlu0 %v344, 15
        %v381 = vpop.permute.xlu0 %380
        %382 = vrot.lane.b32.xlu0 %v345, 15
        %v383 = vpop.permute.xlu0 %382
        %vm384 = vcmp.lt.s32.totalorder %v352, 15
        %v385 = vsel %vm384, %v381, %v383
        %v386 = vsel %vm384, %v383, %v381
        %s387 = scalar_lea.vmem [#allocation5], 4
        %v388 = vld [vmem:[%s387] sm:$0x3]
        %v390 = vperm.slane %v388, 0
        %v391 = vperm.slane %v388, 1
        %v394 = vmul.f32 %v386, %v390
        %v395 = vmul.f32 %v385, %v391
        %396 = vrot.lane.b32.xlu0 %v344, 1
        %v397 = vpop.permute.xlu0 %396
        %398 = vrot.lane.b32.xlu0 %v345, 1
        %v399 = vpop.permute.xlu0 %398
        %vm400 = vcmp.lt.s32.totalorder %v352, 1
        %v401 = vsel %vm400, %v397, %v399
        %v402 = vsel %vm400, %v399, %v397
        %s403 = scalar_lea.vmem [#allocation5], 6
        %v404 = vld [vmem:[%s403] sm:$0x3]
        %v406 = vperm.slane %v404, 0
        %v407 = vperm.slane %v404, 1
        %v410 = vmul.f32 %v402, %v406
        %v411 = vmul.f32 %v401, %v407
        %s412 = scalar_lea.vmem [#allocation5], 8
        %v413 = vld [vmem:[%s412] sm:$0x3]
        %v415 = vperm.slane %v413, 0
        %v416 = vperm.slane %v413, 1
        %v419 = vmul.f32 %v344, %v415
        %v420 = vmul.f32 %v345, %v416
        %421 = vrot.lane.b32.xlu0 %v344, 127
        %v422 = vpop.permute.xlu0 %421
        %423 = vrot.lane.b32.xlu0 %v345, 127
        %v424 = vpop.permute.xlu0 %423
        %vm425 = vcmp.lt.s32.totalorder %v352, 127
        %v426 = vsel %vm425, %v422, %v424
        %v427 = vsel %vm425, %v424, %v422
        %s428 = scalar_lea.vmem [#allocation5], 10
        %v429 = vld [vmem:[%s428] sm:$0x3]
        %v431 = vperm.slane %v429, 0
        %v432 = vperm.slane %v429, 1
        %v435 = vmul.f32 %v426, %v431
        %v436 = vmul.f32 %v427, %v432
        %437 = vrot.lane.b32.xlu0 %v344, 113
        %v438 = vpop.permute.xlu0 %437
        %439 = vrot.lane.b32.xlu0 %v345, 113
        %v440 = vpop.permute.xlu0 %439
        %vm441 = vcmp.lt.s32.totalorder %v352, 113
        %v442 = vsel %vm441, %v438, %v440
        %v443 = vsel %vm441, %v440, %v438
        %s444 = scalar_lea.vmem [#allocation5], 12
        %v445 = vld [vmem:[%s444] sm:$0x3]
        %v447 = vperm.slane %v445, 0
        %v448 = vperm.slane %v445, 1
        %v451 = vmul.f32 %v442, %v447
        %v452 = vmul.f32 %v443, %v448
        %453 = vrot.lane.b32.xlu0 %v344, 112
        %v454 = vpop.permute.xlu0 %453
        %455 = vrot.lane.b32.xlu0 %v345, 112
        %v456 = vpop.permute.xlu0 %455
        %vm457 = vcmp.lt.s32.totalorder %v352, 112
        %v458 = vsel %vm457, %v454, %v456
        %v459 = vsel %vm457, %v456, %v454
        %s460 = scalar_lea.vmem [#allocation5], 14
        %v461 = vld [vmem:[%s460] sm:$0x3]
        %v463 = vperm.slane %v461, 0
        %v464 = vperm.slane %v461, 1
        %v467 = vmul.f32 %v458, %v463
        %v468 = vmul.f32 %v459, %v464
        %469 = vrot.lane.b32.xlu0 %v344, 111
        %v470 = vpop.permute.xlu0 %469
        %471 = vrot.lane.b32.xlu0 %v345, 111
        %v472 = vpop.permute.xlu0 %471
        %vm473 = vcmp.lt.s32.totalorder %v352, 111
        %v474 = vsel %vm473, %v470, %v472
        %v475 = vsel %vm473, %v472, %v470
        %s476 = scalar_lea.vmem [#allocation5], 16
        %v477 = vld [vmem:[%s476] sm:$0x3]
        %v479 = vperm.slane %v477, 0
        %v480 = vperm.slane %v477, 1
        %v483 = vmul.f32 %v474, %v479
        %v484 = vmul.f32 %v475, %v480
        %vm485 = vcmask 588800
        %v487 = vsel %vm485, %v346, 0
        %489 = vmatpush.msra.mxu0 0.0
        %490 = vmatpush.msra.mxu0 0.0
        %491 = vmatpush.msra.mxu0 0.0
        %492 = vmatpush.msra.mxu0 0.0
        %493 = vmatpush.msra.mxu0 0.0
        %494 = vmatpush.msra.mxu0 0.0
        %495 = vmatpush.msra.mxu0 0.0
        %496 = vmatpush.msra.mxu0 %v483
        %497 = vmatpush.msra.mxu0 %v467
        %498 = vmatpush.msra.mxu0 %v451
        %499 = vmatpush.msra.mxu0 %v435
        %500 = vmatpush.msra.mxu0 %v419
        %501 = vmatpush.msra.mxu0 %v410
        %502 = vmatpush.msra.mxu0 %v394
        %503 = vmatpush.msra.mxu0 %v378
        %504 = vmatpush.msra.mxu0 %v362
        %505 = vmatmul.f32.gmra.mxu0 %v487
        %v506 = vpop.f32.mrf.mxu0
        %v507 = vadd.f32 0.0, %v506
        %508 = vdwg.mxu0
        %509 = vmatpush.msra.mxu0 0.0
        %510 = vmatpush.msra.mxu0 0.0
        %511 = vmatpush.msra.mxu0 0.0
        %512 = vmatpush.msra.mxu0 0.0
        %513 = vmatpush.msra.mxu0 0.0
        %514 = vmatpush.msra.mxu0 0.0
        %515 = vmatpush.msra.mxu0 0.0
        %516 = vmatpush.msra.mxu0 %v484
        %517 = vmatpush.msra.mxu0 %v468
        %518 = vmatpush.msra.mxu0 %v452
        %519 = vmatpush.msra.mxu0 %v436
        %520 = vmatpush.msra.mxu0 %v420
        %521 = vmatpush.msra.mxu0 %v411
        %522 = vmatpush.msra.mxu0 %v395
        %523 = vmatpush.msra.mxu0 %v379
        %524 = vmatpush.msra.mxu0 %v363
        %525 = vmatmul.f32.gmra.mxu0 %v487
        %v526 = vpop.f32.mrf.mxu0
        %v527 = vadd.f32 0.0, %v526
        %528 = vdwg.mxu0
        %v529 = vld [vmem:[%s2] sm:$0xff]
        %531 = vset.pattern.permute.xlu0 0
        %532 = vperm.xlu0 %531, %v529
        %v533 = vpop.permute.xlu0 %532
        %v535 = vmul.f32 %v507, %v533
        %v536 = vmul.f32 %v527, %v533
        %v537 = vld [vmem:[%s3] sm:$0xff]
        %539 = vset.pattern.permute.xlu0 0
        %540 = vperm.xlu0 %539, %v537
        %v541 = vpop.permute.xlu0 %540
        %v543 = vadd.f32 %v535, %v541
        %v544 = vadd.f32 %v536, %v541
        %v545 = vmax.f32 %v543, 0.0
        %v546 = vmax.f32 %v544, 0.0
        %v547 = vld [vmem:[%s4] sm:$0xf]
        %548 = vrot.lane.b32.xlu0 %v545, 17
        %v549 = vpop.permute.xlu0 %548
        %550 = vrot.lane.b32.xlu0 %v546, 17
        %v551 = vpop.permute.xlu0 %550
        %v552 = vsel %vm353, %v549, %v551
        %v553 = vsel %vm353, %v551, %v549
        %v554 = vmul.f32 %v553, %v358
        %v555 = vmul.f32 %v552, %v359
        %556 = vrot.lane.b32.xlu0 %v545, 16
        %v557 = vpop.permute.xlu0 %556
        %558 = vrot.lane.b32.xlu0 %v546, 16
        %v559 = vpop.permute.xlu0 %558
        %v560 = vsel %vm368, %v557, %v559
        %v561 = vsel %vm368, %v559, %v557
        %v562 = vmul.f32 %v561, %v374
        %v563 = vmul.f32 %v560, %v375
        %564 = vrot.lane.b32.xlu0 %v545, 15
        %v565 = vpop.permute.xlu0 %564
        %566 = vrot.lane.b32.xlu0 %v546, 15
        %v567 = vpop.permute.xlu0 %566
        %v568 = vsel %vm384, %v565, %v567
        %v569 = vsel %vm384, %v567, %v565
        %v570 = vmul.f32 %v569, %v390
        %v571 = vmul.f32 %v568, %v391
        %572 = vrot.lane.b32.xlu0 %v545, 1
        %v573 = vpop.permute.xlu0 %572
        %574 = vrot.lane.b32.xlu0 %v546, 1
        %v575 = vpop.permute.xlu0 %574
        %v576 = vsel %vm400, %v573, %v575
        %v577 = vsel %vm400, %v575, %v573
        %v578 = vmul.f32 %v577, %v406
        %v579 = vmul.f32 %v576, %v407
        %v580 = vmul.f32 %v545, %v415
        %v581 = vmul.f32 %v546, %v416
        %582 = vrot.lane.b32.xlu0 %v545, 127
        %v583 = vpop.permute.xlu0 %582
        %584 = vrot.lane.b32.xlu0 %v546, 127
        %v585 = vpop.permute.xlu0 %584
        %v586 = vsel %vm425, %v583, %v585
        %v587 = vsel %vm425, %v585, %v583
        %v588 = vmul.f32 %v586, %v431
        %v589 = vmul.f32 %v587, %v432
        %590 = vrot.lane.b32.xlu0 %v545, 113
        %v591 = vpop.permute.xlu0 %590
        %592 = vrot.lane.b32.xlu0 %v546, 113
        %v593 = vpop.permute.xlu0 %592
        %v594 = vsel %vm441, %v591, %v593
        %v595 = vsel %vm441, %v593, %v591
        %v596 = vmul.f32 %v594, %v447
        %v597 = vmul.f32 %v595, %v448
        %598 = vrot.lane.b32.xlu0 %v545, 112
        %v599 = vpop.permute.xlu0 %598
        %600 = vrot.lane.b32.xlu0 %v546, 112
        %v601 = vpop.permute.xlu0 %600
        %v602 = vsel %vm457, %v599, %v601
        %v603 = vsel %vm457, %v601, %v599
        %v604 = vmul.f32 %v602, %v463
        %v605 = vmul.f32 %v603, %v464
        %606 = vrot.lane.b32.xlu0 %v545, 111
        %v607 = vpop.permute.xlu0 %606
        %608 = vrot.lane.b32.xlu0 %v546, 111
        %v609 = vpop.permute.xlu0 %608
        %v610 = vsel %vm473, %v607, %v609
        %v611 = vsel %vm473, %v609, %v607
        %v612 = vmul.f32 %v610, %v479
        %v613 = vmul.f32 %v611, %v480
        %v615 = vsel %vm485, %v547, 0
        %617 = vmatpush.msra.mxu0 0.0
        %618 = vmatpush.msra.mxu0 0.0
        %619 = vmatpush.msra.mxu0 0.0
        %620 = vmatpush.msra.mxu0 0.0
        %621 = vmatpush.msra.mxu0 0.0
        %622 = vmatpush.msra.mxu0 0.0
        %623 = vmatpush.msra.mxu0 0.0
        %624 = vmatpush.msra.mxu0 %v612
        %625 = vmatpush.msra.mxu0 %v604
        %626 = vmatpush.msra.mxu0 %v596
        %627 = vmatpush.msra.mxu0 %v588
        %628 = vmatpush.msra.mxu0 %v580
        %629 = vmatpush.msra.mxu0 %v578
        %630 = vmatpush.msra.mxu0 %v570
        %631 = vmatpush.msra.mxu0 %v562
        %632 = vmatpush.msra.mxu0 %v554
        %633 = vmatmul.f32.gmra.mxu0 %v615
        %v634 = vpop.f32.mrf.mxu0
        %v635 = vadd.f32 0.0, %v634
        %636 = vdwg.mxu0
        %637 = vmatpush.msra.mxu0 0.0
        %638 = vmatpush.msra.mxu0 0.0
        %639 = vmatpush.msra.mxu0 0.0
        %640 = vmatpush.msra.mxu0 0.0
        %641 = vmatpush.msra.mxu0 0.0
        %642 = vmatpush.msra.mxu0 0.0
        %643 = vmatpush.msra.mxu0 0.0
        %644 = vmatpush.msra.mxu0 %v613
        %645 = vmatpush.msra.mxu0 %v605
        %646 = vmatpush.msra.mxu0 %v597
        %647 = vmatpush.msra.mxu0 %v589
        %648 = vmatpush.msra.mxu0 %v581
        %649 = vmatpush.msra.mxu0 %v579
        %650 = vmatpush.msra.mxu0 %v571
        %651 = vmatpush.msra.mxu0 %v563
        %652 = vmatpush.msra.mxu0 %v555
        %653 = vmatmul.f32.gmra.mxu0 %v615
        %v654 = vpop.f32.mrf.mxu0
        %v655 = vadd.f32 0.0, %v654
        %656 = vdwg.mxu0
        %v657 = vld [vmem:[%s5] sm:$0xf]
        %659 = vset.pattern.permute.xlu0 0
        %660 = vperm.xlu0 %659, %v657
        %v661 = vpop.permute.xlu0 %660
        %v663 = vmul.f32 %v635, %v661
        %v664 = vmul.f32 %v655, %v661
        %v665 = vld [vmem:[%s6] sm:$0xf]
        %667 = vset.pattern.permute.xlu0 0
        %668 = vperm.xlu0 %667, %v665
        %v669 = vpop.permute.xlu0 %668
        %v671 = vadd.f32 %v663, %v669
        %v672 = vadd.f32 %v664, %v669
        %v673 = vmax.f32 %v671, 0.0
        %v674 = vmax.f32 %v672, 0.0
        %675 = vst [vmem:[#allocation1] ss:$2 sm:$0xff] %v336
        %v676 = vld.sshfl [vmem:[#allocation1] sm:$0xff pattern:$0x75316420]
        %v677 = vld.sshfl [vmem:[#allocation1 + $0x8] sm:$0xff pattern:$0x75316420]
        %v680 = vadd.f32 %v673, %v676
        %v681 = vadd.f32 %v674, %v677
        %v684 = vrot.slane %v681, 4
        %v685 = vsel %vm343, %v680, %v684
        %687 = vst [vmem:[%s330] sm:$0xff] %v685
        %s688 = sand.u32 %s205, 1
        %s689 = scalar_lea.sflag [#allocation4], %s688
        %s690 = sand.u32 %s205, 1
        %s691 = smul.addr %s690, 8
        %s692 = scalar_lea.vmem [#allocation7], %s691
        // Predicated region
        $region61: #{tpu_custom_call.1} parent=51 // pred_check
          %p693 = pneg %p215
        $region62: #{tpu_custom_call.1} parent=51 // pred_check_branch
          %695 = sbr.rel (%p693) target = $region64
        $region63: #{tpu_custom_call.1} parent=51 // pred_region
          %697 = vsyncadd %s689, 0
          %s698 = smul.addr %s24, 2
          %s699 = smul.addr %s698, 4
          %s700 = scalar_lea.hbm %s8, %s699
          %s702 = sshll.u32 %s692, 4
          %s703 = int_to_ptr.vmem [resolvable:$true] %s702
          %s704 = sshll.u32 %s700, 4
          %s705 = int_to_ptr.hbm [resolvable:$true] %s704
          %707 = dma.vmem_to_hbm [thread:$0]  %s703, 128, %s705, %s689
        $region64: #{tpu_custom_call.1} parent=51 // pred_fallthru
          _
      $region52: #{tpu_custom_call.1} parent=5 // pred_fallthru
        _
      %p708 = scmp.le.s32.totalorder 2, %s19
      // Predicated region
      $region65: #{tpu_custom_call.1} parent=5 // pred_check
        %p709 = pneg %p708
      $region66: #{tpu_custom_call.1} parent=5 // pred_check_branch
        %711 = sbr.rel (%p709) target = $region68
      $region67: #{tpu_custom_call.1} parent=5 // pred_region
        %s712 = ssub.s32 %s19, 2
        // Predicated region
        $region69: #{tpu_custom_call.1} parent=67 // pred_check
          %p713 = pneg %p221
        $region70: #{tpu_custom_call.1} parent=67 // pred_check_branch
          %715 = sbr.rel (%p713) target = $region72
        $region71: #{tpu_custom_call.1} parent=67 // pred_region
          %s716 = sand.u32 %s206, 1
          %s717 = scalar_lea.sflag [#allocation4], %s716
          %s718 = sand.u32 %s206, 1
          %s719 = smul.addr %s718, 8
          %s720 = scalar_lea.vmem [#allocation7], %s719
          %722 = dma.done %s717, 128
        $region72: #{tpu_custom_call.1} parent=67 // pred_fallthru
          _
      $region68: #{tpu_custom_call.1} parent=5 // pred_fallthru
        _
    $region6: #{tpu_custom_call.1} parent=1 // loop_footer
      %s23 = sadd.s32 1, %s19
    $region7: #{tpu_custom_call.1} parent=1 // loop_footer_branch
      %18 = sbr.rel target = $region3
    $region8: #{tpu_custom_call.1} parent=1 // loop_exit
      _
    %723 = vsyncpa [#allocation3], 1
    %s724 = scalar_lea.sflag [#allocation3], 1
    %725 = vsyncpa %s724, 1
    %726 = vsyncpa [#allocation6], 1
    %727 = vsyncpa [#allocation4], 1
    %s728 = scalar_lea.sflag [#allocation4], 1
    %729 = vsyncpa %s728, 1

</llo_original>
